<compile_context>
chip_gen: v7x
topology: tpu7x:2x2x1
jax: 0.10.0
libtpu: 0.0.40
codegen_flags: <defaults>
</compile_context>

<pallas_src>
import functools

import jax
import jax.numpy as jnp
from jax import lax
from jax.experimental import pallas as pl
from jax.experimental.pallas import tpu as pltpu

_LANE = 128
_SUBLANE = 8
_TILE_BYTES_PER_INPUT = 4 << 20   # per input per pipeline buffer (f32 -> 8192 rows)
_VMEM_BUDGET = 48 << 20           # in-buffers + f32 temps cap (< v7x 64 MiB/TC)


def _sublane_packing(dtype):
    """Rows-per-vreg packing: 8 for 32-bit, 16 for bf16/fp16, 32 for int8."""
    return _SUBLANE * max(1, 4 // jnp.dtype(dtype).itemsize)


def _dice_partial_kernel(x_ref, t_ref, prod_ref, sum_ref, *,
                         rows, block_rows, blocks_per_split,
                         need_mask, edge_start):
    """Accumulate per-lane partial sums of x*t and x+t into (8,128) blocks.

    grid = (n_split, blocks_per_split); the inner axis is the running
    reduction into the resident (8,128) output partial block of this split.
    """
    c = pl.program_id(0)
    i = pl.program_id(1)

    @pl.when(i == 0)
    def _():
        prod_ref[...] = jnp.zeros_like(prod_ref)
        sum_ref[...] = jnp.zeros_like(sum_ref)

    x = x_ref[...].astype(jnp.float32)
    t = t_ref[...].astype(jnp.float32)
    prod = x * t
    ssum = x + t

    def _accumulate(p, s):
        # Fold (block_rows, 128) -> (8, 128): pure VPU adds, no cross-lane reduce.
        prod_ref[...] += p.reshape(block_rows // _SUBLANE, _SUBLANE, _LANE).sum(axis=0)
        sum_ref[...] += s.reshape(block_rows // _SUBLANE, _SUBLANE, _LANE).sum(axis=0)

    if not need_mask:
        _accumulate(prod, ssum)
    else:
        bi = c * blocks_per_split + i          # global (unclamped) block index

        @pl.when(bi < edge_start)              # interior blocks: lean, unmasked path
        def _():
            _accumulate(prod, ssum)

        @pl.when(bi >= edge_start)             # ragged last block / clamped overrun
        def _():
            row0 = bi * block_rows
            row_ids = row0 + lax.broadcasted_iota(jnp.int32, (block_rows, _LANE), 0)
            valid = row_ids < rows
            _accumulate(jnp.where(valid, prod, 0.0), jnp.where(valid, ssum, 0.0))


def dice_loss(input_arr, target_arr, *, block_rows=None):
    """Dice loss matching the PyTorch DiceLoss.forward (float32 scalar)."""
    assert input_arr.shape == target_arr.shape
    x = jnp.ravel(input_arr)
    t = jnp.ravel(target_arr)
    total = x.shape[0]

    packing = max(_sublane_packing(x.dtype), _sublane_packing(t.dtype))
    align = packing * _LANE

    # Split into kernel bulk + tiny tail (no full-array jnp.pad copy).
    bulk = (total // align) * align

    inter = jnp.float32(0.0)
    denom = jnp.float32(0.0)
    if bulk < total:
        xt = x[bulk:].astype(jnp.float32)
        tt = t[bulk:].astype(jnp.float32)
        inter = inter + jnp.sum(xt * tt)
        denom = denom + jnp.sum(xt) + jnp.sum(tt)

    if bulk:                                   # (<align elements total -> pure jnp tail above)
        rows = bulk // _LANE                   # multiple of `packing`
        x_bytes = jnp.dtype(x.dtype).itemsize
        t_bytes = jnp.dtype(t.dtype).itemsize

        if block_rows is None:
            block_rows = _TILE_BYTES_PER_INPUT // (_LANE * max(x_bytes, t_bytes))
        # Round to the packed-sublane multiple and clamp to what fits VMEM.
        per_row_bytes = 2 * _LANE * (x_bytes + t_bytes) + 3 * _LANE * 4
        max_rows = max(packing, (_VMEM_BUDGET // per_row_bytes) // packing * packing)
        block_rows = max(packing, (int(block_rows) // packing) * packing)
        block_rows = min(block_rows, max_rows, rows)

        blocks = -(-rows // block_rows)
        n_split = 2 if blocks > 1 else 1       # v7x: one half per TensorCore
        blocks_per_split = -(-blocks // n_split)
        ragged = rows % block_rows != 0
        overrun = n_split * blocks_per_split != blocks
        need_mask = ragged or overrun
        edge_start = blocks - 1 if ragged else blocks

        x2 = x[:bulk].reshape(rows, _LANE)
        t2 = t[:bulk].reshape(rows, _LANE)

        def in_map(c, i):
            # Clamp overrun steps to re-read the last block; zeroed in-kernel.
            return (jnp.minimum(c * blocks_per_split + i, blocks - 1), 0)

        kernel = functools.partial(
            _dice_partial_kernel,
            rows=rows, block_rows=block_rows, blocks_per_split=blocks_per_split,
            need_mask=need_mask, edge_start=edge_start)

        vmem_limit = int(2 * block_rows * _LANE * (x_bytes + t_bytes)   # 2x buffered ins
                         + 3 * block_rows * _LANE * 4                   # f32 temps
                         + (4 << 20))                                   # outs + slack
        vmem_limit = min(max(vmem_limit, 16 << 20), 56 << 20)

        def run(dim_sem):
            return pl.pallas_call(
                kernel,
                out_shape=(
                    jax.ShapeDtypeStruct((n_split, _SUBLANE, _LANE), jnp.float32),
                    jax.ShapeDtypeStruct((n_split, _SUBLANE, _LANE), jnp.float32),
                ),
                grid_spec=pltpu.PrefetchScalarGridSpec(
                    num_scalar_prefetch=0,
                    grid=(n_split, blocks_per_split),
                    in_specs=[
                        pl.BlockSpec((block_rows, _LANE), in_map),
                        pl.BlockSpec((block_rows, _LANE), in_map),
                    ],
                    out_specs=[
                        pl.BlockSpec((None, _SUBLANE, _LANE), lambda c, i: (c, 0, 0)),
                        pl.BlockSpec((None, _SUBLANE, _LANE), lambda c, i: (c, 0, 0)),
                    ],
                ),
                compiler_params=pltpu.CompilerParams(
                    dimension_semantics=dim_sem,
                    vmem_limit_bytes=vmem_limit,
                ),
            )(x2, t2)

        # Outer axis: independent partials.  On v7x request a real 2-TC split;
        # elsewhere (or if lowering rejects it) use the known-good semantics.
        fallback_sem = ("parallel", "arbitrary")
        core_parallel = getattr(pltpu, "CORE_PARALLEL", None)
        arbitrary = getattr(pltpu, "ARBITRARY", "arbitrary")
        use_core_parallel = False
        if n_split > 1 and core_parallel is not None:
            try:
                kind = jax.devices()[0].device_kind.lower()
            except Exception:
                kind = ""
            use_core_parallel = "v7" in kind

        if use_core_parallel:
            try:
                prod_p, sum_p = run((core_parallel, arbitrary))
            except Exception:
                prod_p, sum_p = run(fallback_sem)
        else:
            prod_p, sum_p = run(fallback_sem)

        # Final tiny cross-lane reduce (2 * n_split * 1024 f32 values).
        inter = inter + jnp.sum(prod_p)
        denom = denom + jnp.sum(sum_p)

    smooth = jnp.float32(1.0)
    return 2.0 * (inter + smooth) / (denom + smooth)


if __name__ == "__main__":
    key = jax.random.PRNGKey(0)
    k1, k2 = jax.random.split(key)

    def ref_loss(a, b):
        smooth = 1.0
        return 2.0 * (jnp.sum(a * b) + smooth) / (jnp.sum(a) + jnp.sum(b) + smooth)

    # NCHW, small shapes: batch=2, channels=4, spatial=16 -> single tile, no mask.
    x = jax.nn.sigmoid(jax.random.normal(k1, (2, 4, 16, 16), dtype=jnp.float32))
    tgt = (jax.random.uniform(k2, (2, 4, 16, 16)) > 0.5).astype(jnp.float32)
    loss = jax.block_until_ready(dice_loss(x, tgt))
    assert jnp.allclose(loss, ref_loss(x, tgt), rtol=1e-5, atol=1e-5), (loss, ref_loss(x, tgt))

    # Multi-block / two-split / ragged-last-block (pl.when-gated mask) path.
    k3, k4 = jax.random.split(k2)
    x2 = jax.nn.sigmoid(jax.random.normal(k3, (3, 4, 16, 16), dtype=jnp.float32))
    t2 = (jax.random.uniform(k4, (3, 4, 16, 16)) > 0.5).astype(jnp.float32)
    loss2 = jax.block_until_ready(dice_loss(x2, t2, block_rows=16))
    assert jnp.allclose(loss2, ref_loss(x2, t2), rtol=1e-5, atol=1e-5), (loss2, ref_loss(x2, t2))

    # Element count not a multiple of 8*128: wrapper-side tail (no jnp.pad copy).
    k5, k6 = jax.random.split(k4)
    x3 = jax.nn.sigmoid(jax.random.normal(k5, (2, 4, 16, 17), dtype=jnp.float32))
    t3 = (jax.random.uniform(k6, (2, 4, 16, 17)) > 0.5).astype(jnp.float32)
    loss3 = jax.block_until_ready(dice_loss(x3, t3))
    assert jnp.allclose(loss3, ref_loss(x3, t3), rtol=1e-5, atol=1e-5), (loss3, ref_loss(x3, t3))

    # TODO(synk): PyTorch returns loss.cpu().numpy(); here we return a JAX f32 scalar.
    print("KERNEL_OK")
</pallas_src>

<mosaic_0001>
module attributes {stable_mosaic.version = 11 : i64} {
  func.func @_dice_partial_kernel(%arg0: i32, %arg1: i32, %arg2: memref<16x128xf32, #tpu.memory_space<vmem>>, %arg3: memref<16x128xf32, #tpu.memory_space<vmem>>, %arg4: memref<1x8x128xf32, #tpu.memory_space<vmem>>, %arg5: memref<1x8x128xf32, #tpu.memory_space<vmem>>) attributes {dimension_semantics = [#tpu.dimension_semantics<parallel>, #tpu.dimension_semantics<arbitrary>], iteration_bounds = array<i64: 1, 1>, scalar_prefetch = 0 : i64, scratch_operands = 0 : i64, tpu.core_type = #tpu.core_type<tc>, window_params = [{transform_indices = @transform_0, window_bounds = array<i64: 16, 128>}, {transform_indices = @transform_1, window_bounds = array<i64: 16, 128>}, {transform_indices = @transform_2, window_bounds = array<i64: 1, 8, 128>}, {transform_indices = @transform_3, window_bounds = array<i64: 1, 8, 128>}]} {
    %c0_i32 = arith.constant 0 : i32
    %0 = arith.cmpi eq, %arg1, %c0_i32 : i32
    %1 = arith.extui %0 : i1 to i32
    %c0_i32_0 = arith.constant 0 : i32
    %2 = arith.cmpi ne, %1, %c0_i32_0 : i32
    scf.if %2 {
      %cst_17 = arith.constant 0.000000e+00 : f32
      %23 = vector.broadcast %cst_17 : f32 to vector<8x128xf32>
      %c0_18 = arith.constant 0 : index
      %c0_19 = arith.constant 0 : index
      %c0_20 = arith.constant 0 : index
      %24 = vector.load %arg4[%c0_18, %c0_19, %c0_20] : memref<1x8x128xf32, #tpu.memory_space<vmem>>, vector<1x8x128xf32>
      %25 = vector.shape_cast %24 : vector<1x8x128xf32> to vector<8x128xf32>
      %26 = vector.shape_cast %23 : vector<8x128xf32> to vector<1x8x128xf32>
      tpu.vector_store %arg4[%c0_18, %c0_19, %c0_20], %26 {strides = array<i32>} : memref<1x8x128xf32, #tpu.memory_space<vmem>>, vector<1x8x128xf32>,
      %cst_21 = arith.constant 0.000000e+00 : f32
      %27 = vector.broadcast %cst_21 : f32 to vector<8x128xf32>
      %c0_22 = arith.constant 0 : index
      %c0_23 = arith.constant 0 : index
      %c0_24 = arith.constant 0 : index
      %28 = vector.load %arg5[%c0_22, %c0_23, %c0_24] : memref<1x8x128xf32, #tpu.memory_space<vmem>>, vector<1x8x128xf32>
      %29 = vector.shape_cast %28 : vector<1x8x128xf32> to vector<8x128xf32>
      %30 = vector.shape_cast %27 : vector<8x128xf32> to vector<1x8x128xf32>
      tpu.vector_store %arg5[%c0_22, %c0_23, %c0_24], %30 {strides = array<i32>} : memref<1x8x128xf32, #tpu.memory_space<vmem>>, vector<1x8x128xf32>,
    } else {
    }
    %c0 = arith.constant 0 : index
    %c0_1 = arith.constant 0 : index
    %3 = vector.load %arg2[%c0, %c0_1] : memref<16x128xf32, #tpu.memory_space<vmem>>, vector<16x128xf32>
    %c0_2 = arith.constant 0 : index
    %c0_3 = arith.constant 0 : index
    %4 = vector.load %arg3[%c0_2, %c0_3] : memref<16x128xf32, #tpu.memory_space<vmem>>, vector<16x128xf32>
    %5 = arith.mulf %3, %4 : vector<16x128xf32>
    %6 = arith.addf %3, %4 : vector<16x128xf32>
    %c0_4 = arith.constant 0 : index
    %c0_5 = arith.constant 0 : index
    %c0_6 = arith.constant 0 : index
    %7 = vector.load %arg4[%c0_4, %c0_5, %c0_6] : memref<1x8x128xf32, #tpu.memory_space<vmem>>, vector<1x8x128xf32>
    %8 = vector.shape_cast %7 : vector<1x8x128xf32> to vector<8x128xf32>
    %9 = vector.shape_cast %5 : vector<16x128xf32> to vector<2x8x128xf32>
    %cst = arith.constant dense<0.000000e+00> : vector<8x128xf32>
    %10 = vector.multi_reduction <add>, %9, %cst [0] : vector<2x8x128xf32> to vector<8x128xf32>
    %11 = arith.addf %8, %10 : vector<8x128xf32>
    %c0_7 = arith.constant 0 : index
    %c0_8 = arith.constant 0 : index
    %c0_9 = arith.constant 0 : index
    %12 = vector.load %arg4[%c0_7, %c0_8, %c0_9] : memref<1x8x128xf32, #tpu.memory_space<vmem>>, vector<1x8x128xf32>
    %13 = vector.shape_cast %12 : vector<1x8x128xf32> to vector<8x128xf32>
    %14 = vector.shape_cast %11 : vector<8x128xf32> to vector<1x8x128xf32>
    tpu.vector_store %arg4[%c0_7, %c0_8, %c0_9], %14 {strides = array<i32>} : memref<1x8x128xf32, #tpu.memory_space<vmem>>, vector<1x8x128xf32>,
    %c0_10 = arith.constant 0 : index
    %c0_11 = arith.constant 0 : index
    %c0_12 = arith.constant 0 : index
    %15 = vector.load %arg5[%c0_10, %c0_11, %c0_12] : memref<1x8x128xf32, #tpu.memory_space<vmem>>, vector<1x8x128xf32>
    %16 = vector.shape_cast %15 : vector<1x8x128xf32> to vector<8x128xf32>
    %17 = vector.shape_cast %6 : vector<16x128xf32> to vector<2x8x128xf32>
    %cst_13 = arith.constant dense<0.000000e+00> : vector<8x128xf32>
    %18 = vector.multi_reduction <add>, %17, %cst_13 [0] : vector<2x8x128xf32> to vector<8x128xf32>
    %19 = arith.addf %16, %18 : vector<8x128xf32>
    %c0_14 = arith.constant 0 : index
    %c0_15 = arith.constant 0 : index
    %c0_16 = arith.constant 0 : index
    %20 = vector.load %arg5[%c0_14, %c0_15, %c0_16] : memref<1x8x128xf32, #tpu.memory_space<vmem>>, vector<1x8x128xf32>
    %21 = vector.shape_cast %20 : vector<1x8x128xf32> to vector<8x128xf32>
    %22 = vector.shape_cast %19 : vector<8x128xf32> to vector<1x8x128xf32>
    tpu.vector_store %arg5[%c0_14, %c0_15, %c0_16], %22 {strides = array<i32>} : memref<1x8x128xf32, #tpu.memory_space<vmem>>, vector<1x8x128xf32>,
    return
  }
  func.func @transform_0(%arg0: i32, %arg1: i32) -> (i32, i32) {
    %c1_i32 = arith.constant 1 : i32
    %0 = arith.muli %arg0, %c1_i32 : i32
    %1 = arith.addi %0, %arg1 : i32
    %c0_i32 = arith.constant 0 : i32
    %2 = arith.minsi %1, %c0_i32 : i32
    %c0_i32_0 = arith.constant 0 : i32
    %c0_i32_1 = arith.constant 0 : i32
    return %2, %c0_i32_0 : i32, i32
  }
  func.func @transform_1(%arg0: i32, %arg1: i32) -> (i32, i32) {
    %c1_i32 = arith.constant 1 : i32
    %0 = arith.muli %arg0, %c1_i32 : i32
    %1 = arith.addi %0, %arg1 : i32
    %c0_i32 = arith.constant 0 : i32
    %2 = arith.minsi %1, %c0_i32 : i32
    %c0_i32_0 = arith.constant 0 : i32
    %c0_i32_1 = arith.constant 0 : i32
    return %2, %c0_i32_0 : i32, i32
  }
  func.func @transform_2(%arg0: i32, %arg1: i32) -> (i32, i32, i32) {
    %c0_i32 = arith.constant 0 : i32
    %c0_i32_0 = arith.constant 0 : i32
    %c0_i32_1 = arith.constant 0 : i32
    return %arg0, %c0_i32, %c0_i32_0 : i32, i32, i32
  }
  func.func @transform_3(%arg0: i32, %arg1: i32) -> (i32, i32, i32) {
    %c0_i32 = arith.constant 0 : i32
    %c0_i32_0 = arith.constant 0 : i32
    %c0_i32_1 = arith.constant 0 : i32
    return %arg0, %c0_i32, %c0_i32_0 : i32, i32, i32
  }
}

</mosaic_0001>

<llo_original>
// kernel: tpu_custom_call.1
$region0: #{tpu_custom_call.1}
  #allocation0 [shape = 'u32[]', space=smem, size = 0x4, offset = 0x4, fixed_abs, tag = 'smem constant byte address 0x4 - core index']
  #allocation1 [shape = 'u32[144,128]{1,0:T(1,128)}', space=vmem, size = 0x12000, scoped, tag = 'internal scratch']
  %s0 = inlined_call_operand.hbm [shape: f32[16,128], index: 0, kind: input, shape index: {}]
  %s1 = inlined_call_operand.hbm [shape: f32[16,128], index: 1, kind: input, shape index: {}]
  %s2 = inlined_call_operand.hbm [shape: f32[1,8,128], index: 2, kind: output, shape index: {0}]
  %s3 = inlined_call_operand.hbm [shape: f32[1,8,128], index: 3, kind: output, shape index: {1}]
  %4 = xla_tuple %s2, %s3
  %s5 = sld [smem:[#allocation0]]
  $region38: #{tpu_custom_call.1} parent=0
    _
  %s7 = ssub.s32 1, %s5
  %s8 = scalar_select 0, %s7, %s5
  $region1: #{tpu_custom_call.1} parent=0
    #allocation2 [shape = 'u8[8192]{0}', space=vmem, size = 0x2000, scoped, tag = 'input window, operand 0, single buffered']
    #allocation3 [shape = 's32[1]{0}', space=sflag, size = 0x4, scoped, tag = 'scoped memory for tpu_custom_call.1']
    #allocation4 [shape = 's32[1]{0}', space=sflag, size = 0x4, scoped, tag = 'scoped memory for tpu_custom_call.1']
    #allocation5 [shape = 'u8[8192]{0}', space=vmem, size = 0x2000, scoped, tag = 'input window, operand 1, single buffered']
    #allocation6 [shape = 's32[1]{0}', space=sflag, size = 0x4, scoped, tag = 'scoped memory for tpu_custom_call.1']
    #allocation7 [shape = 'u8[4096]{0}', space=vmem, size = 0x1000, scoped, tag = 'output window, operand 0, single buffered']
    #allocation8 [shape = 'u8[4096]{0}', space=vmem, size = 0x1000, scoped, tag = 'output window, operand 1, single buffered']
    #allocation9 [shape = 's32[1]{0}', space=sflag, size = 0x4, scoped, tag = 'scoped memory for tpu_custom_call.1']
    %9 = vsyncpa [#allocation3], 0
    %10 = vsyncpa [#allocation6], 0
    %11 = vsyncpa [#allocation4], 0
    %12 = vsyncpa [#allocation9], 0
    // Predicated region
    $region2: #{tpu_custom_call.1} parent=1 // pred_check
      _
    $region3: #{tpu_custom_call.1} parent=1 // pred_check_branch
      %14 = sbr.rel (0) target = $region5
    $region4: #{tpu_custom_call.1} parent=1 // pred_region
      %s15 = sadd.s32 0, 0
      %p16 = scmp.lt.s32.totalorder %s15, 0
      %s17 = scalar_select %p16, %s15, 0
      %s18 = smul.u32 2, %s17
      %s20 = ssub.s32 256, 256
      %21 = vsyncadd [#allocation3], %s20
      %s22 = smul.addr %s18, 128
      %s23 = scalar_lea.hbm %s0, %s22
      %s24 = sshll.u32 [#allocation2], 4
      %s25 = int_to_ptr.vmem [resolvable:$true] %s24
      %30 = dma.hbm_to_vmem [thread:$0]  %s23, 256, %s25, [#allocation3], 128, 128, 8
    $region5: #{tpu_custom_call.1} parent=1 // pred_fallthru
      _
    // Predicated region
    $region6: #{tpu_custom_call.1} parent=1 // pred_check
      _
    $region7: #{tpu_custom_call.1} parent=1 // pred_check_branch
      %32 = sbr.rel (0) target = $region9
    $region8: #{tpu_custom_call.1} parent=1 // pred_region
      %s33 = sadd.s32 0, 0
      %p34 = scmp.lt.s32.totalorder %s33, 0
      %s35 = scalar_select %p34, %s33, 0
      %s36 = smul.u32 2, %s35
      %s38 = ssub.s32 256, 256
      %39 = vsyncadd [#allocation6], %s38
      %s40 = smul.addr %s36, 128
      %s41 = scalar_lea.hbm %s1, %s40
      %s42 = sshll.u32 [#allocation5], 4
      %s43 = int_to_ptr.vmem [resolvable:$true] %s42
      %48 = dma.hbm_to_vmem [thread:$0]  %s41, 256, %s43, [#allocation6], 128, 128, 8
    $region9: #{tpu_custom_call.1} parent=1 // pred_fallthru
      _
    // Predicated region
    $region10: #{tpu_custom_call.1} parent=1 // pred_check
      _
    $region11: #{tpu_custom_call.1} parent=1 // pred_check_branch
      %50 = sbr.rel (0) target = $region13
    $region12: #{tpu_custom_call.1} parent=1 // pred_region
      %51 = dma.done [#allocation3], 256
    $region13: #{tpu_custom_call.1} parent=1 // pred_fallthru
      _
    // Predicated region
    $region14: #{tpu_custom_call.1} parent=1 // pred_check
      _
    $region15: #{tpu_custom_call.1} parent=1 // pred_check_branch
      %53 = sbr.rel (0) target = $region17
    $region16: #{tpu_custom_call.1} parent=1 // pred_region
      %54 = dma.done [#allocation6], 256
    $region17: #{tpu_custom_call.1} parent=1 // pred_fallthru
      _
    %s55 = sadd.s32 0, 0
    %p56 = scmp.lt.s32.totalorder %s55, 0
    %s57 = scalar_select %p56, %s55, 0
    %s58 = smul.u32 2, %s57
    %s59 = sadd.s32 0, 0
    %p60 = scmp.lt.s32.totalorder %s59, 0
    %s61 = scalar_select %p60, %s59, 0
    %s62 = smul.u32 2, %s61
    %p63 = scmp.eq.s32.totalorder 0, 0
    // Predicated region
    $region18: #{tpu_custom_call.1} parent=1 // pred_check
      %p64 = pneg %p63
    $region19: #{tpu_custom_call.1} parent=1 // pred_check_branch
      %66 = sbr.rel (%p64) target = $region21
    $region20: #{tpu_custom_call.1} parent=1 // pred_region
      %67 = vst [vmem:[#allocation7] sm:$0xff] 0.0
      %68 = vst [vmem:[#allocation8] sm:$0xff] 0.0
    $region21: #{tpu_custom_call.1} parent=1 // pred_fallthru
      _
    %v69 = vld [vmem:[#allocation2] sm:$0xff]
    %v70 = vld [vmem:[#allocation2 + $0x8] sm:$0xff]
    %v71 = vld [vmem:[#allocation5] sm:$0xff]
    %v72 = vld [vmem:[#allocation5 + $0x8] sm:$0xff]
    %v73 = vmul.f32 %v69, %v71
    %v74 = vmul.f32 %v70, %v72
    %v75 = vadd.f32 %v69, %v71
    %v76 = vadd.f32 %v70, %v72
    %v77 = vld [vmem:[#allocation7] sm:$0xff]
    %v78 = vadd.f32 %v73, %v74
    %v79 = vadd.f32 %v77, %v78
    %80 = vst [vmem:[#allocation7] sm:$0xff] %v79
    %v81 = vld [vmem:[#allocation8] sm:$0xff]
    %v82 = vadd.f32 %v75, %v76
    %v83 = vadd.f32 %v81, %v82
    %84 = vst [vmem:[#allocation8] sm:$0xff] %v83
    // Predicated region
    $region22: #{tpu_custom_call.1} parent=1 // pred_check
      _
    $region23: #{tpu_custom_call.1} parent=1 // pred_check_branch
      %86 = sbr.rel (0) target = $region25
    $region24: #{tpu_custom_call.1} parent=1 // pred_region
      %s88 = ssub.s32 128, 128
      %89 = vsyncadd [#allocation4], %s88
      %s91 = sshll.u32 [#allocation7], 4
      %s92 = int_to_ptr.vmem [resolvable:$true] %s91
      %94 = dma.vmem_to_hbm [thread:$0]  %s92, 128, %s2, [#allocation4]
    $region25: #{tpu_custom_call.1} parent=1 // pred_fallthru
      _
    // Predicated region
    $region26: #{tpu_custom_call.1} parent=1 // pred_check
      _
    $region27: #{tpu_custom_call.1} parent=1 // pred_check_branch
      %96 = sbr.rel (0) target = $region29
    $region28: #{tpu_custom_call.1} parent=1 // pred_region
      %s98 = ssub.s32 128, 128
      %99 = vsyncadd [#allocation9], %s98
      %s101 = sshll.u32 [#allocation8], 4
      %s102 = int_to_ptr.vmem [resolvable:$true] %s101
      %104 = dma.vmem_to_hbm [thread:$0]  %s102, 128, %s3, [#allocation9]
    $region29: #{tpu_custom_call.1} parent=1 // pred_fallthru
      _
    // Predicated region
    $region30: #{tpu_custom_call.1} parent=1 // pred_check
      _
    $region31: #{tpu_custom_call.1} parent=1 // pred_check_branch
      %106 = sbr.rel (0) target = $region33
    $region32: #{tpu_custom_call.1} parent=1 // pred_region
      %107 = dma.done [#allocation4], 128
    $region33: #{tpu_custom_call.1} parent=1 // pred_fallthru
      _
    // Predicated region
    $region34: #{tpu_custom_call.1} parent=1 // pred_check
      _
    $region35: #{tpu_custom_call.1} parent=1 // pred_check_branch
      %109 = sbr.rel (0) target = $region37
    $region36: #{tpu_custom_call.1} parent=1 // pred_region
      %110 = dma.done [#allocation9], 128
    $region37: #{tpu_custom_call.1} parent=1 // pred_fallthru
      _
    %111 = vsyncpa [#allocation3], 1
    %112 = vsyncpa [#allocation6], 1
    %113 = vsyncpa [#allocation4], 1
    %114 = vsyncpa [#allocation9], 1

</llo_original>
